<compile_context>
chip_gen: v7x
topology: tpu7x:2x2x1
jax: 0.10.0
libtpu: 0.0.40
codegen_flags: <defaults>
</compile_context>

<pallas_src>
import functools

import numpy as np
import jax
import jax.numpy as jnp
from jax import lax
from jax.experimental import pallas as pl
from jax.experimental.pallas import tpu as pltpu

EPS = 1e-5


# ---------------------------------------------------------------------------
# Pallas kernels
# ---------------------------------------------------------------------------
def _conv_bn_relu_kernel(p_ref, w_ref, scale_ref, shift_ref, o_ref):
    # (tm, K) @ (K, C) on the MXU (bf16 in, f32 accumulate), then folded-BN affine + ReLU
    acc = jnp.dot(p_ref[...], w_ref[...], preferred_element_type=jnp.float32)
    o_ref[...] = jnp.maximum(acc * scale_ref[...] + shift_ref[...], 0.0).astype(o_ref.dtype)


def conv_bn_relu(patches, w2d, scale, shift):
    M, K = patches.shape
    C = w2d.shape[1]
    # M-tiled grid (megacore-parallel on v7x); whole-M block when small.
    tm = M if M <= 512 else 256
    if M % tm != 0:
        tm = M
    return pl.pallas_call(
        _conv_bn_relu_kernel,
        out_shape=jax.ShapeDtypeStruct((M, C), jnp.bfloat16),
        grid=(M // tm,),
        in_specs=[
            pl.BlockSpec((tm, K), lambda i: (i, 0)),
            pl.BlockSpec((K, C), lambda i: (0, 0)),
            pl.BlockSpec((1, C), lambda i: (0, 0)),
            pl.BlockSpec((1, C), lambda i: (0, 0)),
        ],
        out_specs=pl.BlockSpec((tm, C), lambda i: (i, 0)),
        compiler_params=pltpu.CompilerParams(dimension_semantics=("parallel",)),
    )(patches, w2d, scale, shift)


def _fused_tail_kernel(p_ref, w_ref, scale_ref, shift_ref, wl_ref, bl_ref, o_ref,
                       *, n_b, n_s):
    # conv2 as one MXU matmul over im2col patches (bf16 in, f32 accumulate)
    y = jnp.dot(p_ref[...], w_ref[...], preferred_element_type=jnp.float32)
    # folded BatchNorm affine + ReLU (VPU epilogue)
    y = jnp.maximum(y * scale_ref[...] + shift_ref[...], 0.0)
    # exact 2x2 AvgPool: rows are pre-ordered (dh, dw, ph, pw, b), so the four
    # pool taps are contiguous row blocks of size mp -> three adds + one scale.
    mp = n_s * n_b
    pooled = 0.25 * (y[0:mp] + y[mp:2 * mp] + y[2 * mp:3 * mp] + y[3 * mp:4 * mp])
    # Linear: logits[b] = sum_s pooled[(s, b), :] @ Wl[s]  (weights pre-permuted to
    # NHWC flatten order and lane-padded to a multiple of 128).
    acc = jnp.zeros(o_ref.shape, jnp.float32)
    for s in range(n_s):
        blk = pooled[s * n_b:(s + 1) * n_b, :].astype(jnp.bfloat16)
        acc = acc + jnp.dot(blk, wl_ref[s], preferred_element_type=jnp.float32)
    o_ref[...] = acc + bl_ref[...]


def fused_conv_pool_linear(patches, w2d, scale, shift, wl3, bl_row, *, n_b, n_s):
    M, K = patches.shape            # M = 4 * n_s * n_b
    C = w2d.shape[1]
    npad = wl3.shape[2]
    kernel = functools.partial(_fused_tail_kernel, n_b=n_b, n_s=n_s)
    return pl.pallas_call(
        kernel,
        out_shape=jax.ShapeDtypeStruct((n_b, npad), jnp.float32),
        grid=(1,),
        in_specs=[
            pl.BlockSpec((M, K), lambda i: (0, 0)),
            pl.BlockSpec((K, C), lambda i: (0, 0)),
            pl.BlockSpec((1, C), lambda i: (0, 0)),
            pl.BlockSpec((1, C), lambda i: (0, 0)),
            pl.BlockSpec((n_s, C, npad), lambda i: (0, 0, 0)),
            pl.BlockSpec((1, npad), lambda i: (0, 0)),
        ],
        out_specs=pl.BlockSpec((n_b, npad), lambda i: (0, 0)),
    )(patches, w2d, scale, shift, wl3, bl_row)


# ---------------------------------------------------------------------------
# Glue (layout plumbing / parameter setup), plain JAX
# ---------------------------------------------------------------------------
def conv_out_size(h, k, s, p):
    return (h + 2 * p - k) // s + 1


def im2col(x_nhwc, kh, kw, stride, pad):
    B, H, W, C = x_nhwc.shape
    xp = jnp.pad(x_nhwc, ((0, 0), (pad, pad), (pad, pad), (0, 0)))
    Ho = conv_out_size(H, kh, stride, pad)
    Wo = conv_out_size(W, kw, stride, pad)
    cols = []
    for i in range(kh):
        for j in range(kw):
            cols.append(xp[:, i:i + stride * Ho:stride, j:j + stride * Wo:stride, :])
    patches = jnp.stack(cols, axis=3)                     # (B, Ho, Wo, KH*KW, C)
    return patches.reshape(B, Ho, Wo, kh * kw * C), Ho, Wo


def init_params(key, H, W, n_classes):
    ks = jax.random.split(key, 12)
    w1 = jax.random.normal(ks[0], (64, 1, 5, 5), jnp.float32) * 0.1     # OIHW
    w2 = jax.random.normal(ks[1], (64, 64, 3, 3), jnp.float32) * 0.05   # OIHW
    g1 = 1.0 + 0.1 * jax.random.normal(ks[2], (64,), jnp.float32)
    b1 = 0.1 * jax.random.normal(ks[3], (64,), jnp.float32)
    m1 = 0.05 * jax.random.normal(ks[4], (64,), jnp.float32)
    v1 = 1.0 + 0.1 * jnp.abs(jax.random.normal(ks[5], (64,), jnp.float32))
    g2 = 1.0 + 0.1 * jax.random.normal(ks[6], (64,), jnp.float32)
    b2 = 0.1 * jax.random.normal(ks[7], (64,), jnp.float32)
    m2 = 0.05 * jax.random.normal(ks[8], (64,), jnp.float32)
    v2 = 1.0 + 0.1 * jnp.abs(jax.random.normal(ks[9], (64,), jnp.float32))

    H1, W1 = conv_out_size(H, 5, 2, 2), conv_out_size(W, 5, 2, 2)
    H2, W2 = conv_out_size(H1, 3, 2, 1), conv_out_size(W1, 3, 2, 1)
    Hp, Wp = H2 // 2, W2 // 2
    feat = 64 * Hp * Wp        # linear_input_size from the dummy-input trace

    wl = jax.random.normal(ks[10], (n_classes, feat), jnp.float32) * 0.05   # (out, in)
    bl = 0.01 * jax.random.normal(ks[11], (n_classes,), jnp.float32)

    def fold(g, b, m, v):
        s = g / jnp.sqrt(v + EPS)
        return s.reshape(1, -1), (b - m * s).reshape(1, -1)

    scale1, shift1 = fold(g1, b1, m1, v1)
    scale2, shift2 = fold(g2, b2, m2, v2)

    # Linear weights pre-permuted to NHWC flatten order: rows (s = ph*Wp + pw, c),
    # lane-padded to a multiple of 128 so the logits store is lane-dense.
    npad = ((n_classes + 127) // 128) * 128
    wl3 = wl.reshape(n_classes, 64, Hp * Wp).transpose(2, 1, 0)       # (S, 64, ncls)
    wl3_pad = jnp.pad(wl3, ((0, 0), (0, 0), (0, npad - n_classes))).astype(jnp.bfloat16)
    bl_pad = jnp.pad(bl, (0, npad - n_classes)).reshape(1, npad)

    return dict(
        # f32 originals (for the pure-JAX reference)
        w1=w1, w2=w2, g1=g1, b1=b1, m1=m1, v1=v1, g2=g2, b2=b2, m2=m2, v2=v2,
        wl=wl, bl=bl,
        # bf16 MXU operands; conv rows ordered (kh, kw, cin) to match im2col columns
        w1_2d=jnp.transpose(w1, (2, 3, 1, 0)).reshape(5 * 5 * 1, 64).astype(jnp.bfloat16),
        w2_2d=jnp.transpose(w2, (2, 3, 1, 0)).reshape(3 * 3 * 64, 64).astype(jnp.bfloat16),
        scale1=scale1, shift1=shift1, scale2=scale2, shift2=shift2,
        wl3_pad=wl3_pad, bl_pad=bl_pad,
    )


def student_s_forward(x_nchw, params):
    B = x_nchw.shape[0]
    n_cls = params['bl'].shape[0]
    x = jnp.transpose(x_nchw, (0, 2, 3, 1)).astype(jnp.bfloat16)     # NCHW -> NHWC, bf16

    # conv1 + BN1 + ReLU (Pallas call #1)
    p1, H1, W1 = im2col(x, 5, 5, 2, 2)
    p1 = p1.reshape(B * H1 * W1, 5 * 5 * 1)
    y1 = conv_bn_relu(p1, params['w1_2d'], params['scale1'], params['shift1'])
    y1 = y1.reshape(B, H1, W1, 64)

    # conv2 + BN2 + ReLU + 2x2 AvgPool + Linear, all fused (Pallas call #2).
    p2, H2, W2 = im2col(y1, 3, 3, 2, 1)                  # (B, H2, W2, 576) bf16
    Hp, Wp = H2 // 2, W2 // 2                            # AvgPool2d(2,2) floors odd dims
    K2 = p2.shape[-1]
    p2 = p2[:, :2 * Hp, :2 * Wp, :]
    # row order (dh, dw, ph, pw, b) -> pool taps are contiguous row blocks in-kernel
    p2 = p2.reshape(B, Hp, 2, Wp, 2, K2).transpose(2, 4, 1, 3, 0, 5)
    p2 = p2.reshape(4 * Hp * Wp * B, K2)
    logits_pad = fused_conv_pool_linear(
        p2, params['w2_2d'], params['scale2'], params['shift2'],
        params['wl3_pad'], params['bl_pad'], n_b=B, n_s=Hp * Wp)
    return logits_pad[:, :n_cls]


# pure-JAX reference for a sanity check (no Pallas, f32 HIGHEST precision)
def reference_forward(x_nchw, params):
    def bn(x, g, b, m, v):
        sh = (1, -1, 1, 1)
        return (x - m.reshape(sh)) / jnp.sqrt(v.reshape(sh) + EPS) * g.reshape(sh) + b.reshape(sh)

    x = lax.conv_general_dilated(x_nchw, params['w1'], (2, 2), ((2, 2), (2, 2)),
                                 dimension_numbers=('NCHW', 'OIHW', 'NCHW'),
                                 precision=lax.Precision.HIGHEST)
    x = jnp.maximum(bn(x, params['g1'], params['b1'], params['m1'], params['v1']), 0.0)
    x = lax.conv_general_dilated(x, params['w2'], (2, 2), ((1, 1), (1, 1)),
                                 dimension_numbers=('NCHW', 'OIHW', 'NCHW'),
                                 precision=lax.Precision.HIGHEST)
    x = jnp.maximum(bn(x, params['g2'], params['b2'], params['m2'], params['v2']), 0.0)
    B, C, Hc, Wc = x.shape
    x = x[:, :, :2 * (Hc // 2), :2 * (Wc // 2)]
    x = x.reshape(B, C, Hc // 2, 2, Wc // 2, 2).mean(axis=(3, 5))
    flat = x.reshape(B, -1)
    return jnp.dot(flat, params['wl'].T, precision=lax.Precision.HIGHEST) + params['bl']


if __name__ == "__main__":
    key = jax.random.PRNGKey(0)
    B, H, W, NCLS = 2, 16, 16, 10             # spectrogram 16x16, 10 classes, batch 2
    kx, kp = jax.random.split(key)
    x = jax.random.normal(kx, (B, 1, H, W), jnp.float32)   # NCHW, 1 input channel
    params = init_params(kp, H, W, NCLS)

    fwd = jax.jit(student_s_forward)
    logits = jax.block_until_ready(fwd(x, params))
    ref = jax.block_until_ready(reference_forward(x, params))

    assert logits.shape == (B, NCLS)
    # bf16 single-pass MXU operands vs f32-HIGHEST reference -> loosened tolerance
    np.testing.assert_allclose(np.asarray(logits), np.asarray(ref), rtol=2e-2, atol=2e-2)
    print("KERNEL_OK")
</pallas_src>

<mosaic_0001>
module attributes {stable_mosaic.version = 11 : i64} {
  func.func @_conv_bn_relu_kernel(%arg0: i32, %arg1: memref<128x25xbf16, #tpu.memory_space<vmem>>, %arg2: memref<25x64xbf16, #tpu.memory_space<vmem>>, %arg3: memref<1x64xf32, #tpu.memory_space<vmem>>, %arg4: memref<1x64xf32, #tpu.memory_space<vmem>>, %arg5: memref<128x64xbf16, #tpu.memory_space<vmem>>) attributes {dimension_semantics = [#tpu.dimension_semantics<parallel>], iteration_bounds = array<i64: 1>, scalar_prefetch = 0 : i64, scratch_operands = 0 : i64, tpu.core_type = #tpu.core_type<tc>, window_params = [{transform_indices = @transform_0, window_bounds = array<i64: 128, 25>}, {pipeline_mode = #tpu.pipeline_mode<synchronous>, transform_indices = @transform_1, window_bounds = array<i64: 25, 64>}, {pipeline_mode = #tpu.pipeline_mode<synchronous>, transform_indices = @transform_2, window_bounds = array<i64: 1, 64>}, {pipeline_mode = #tpu.pipeline_mode<synchronous>, transform_indices = @transform_3, window_bounds = array<i64: 1, 64>}, {transform_indices = @transform_4, window_bounds = array<i64: 128, 64>}]} {
    %c0 = arith.constant 0 : index
    %c0_0 = arith.constant 0 : index
    %0 = vector.load %arg1[%c0, %c0_0] : memref<128x25xbf16, #tpu.memory_space<vmem>>, vector<128x25xbf16>
    %c0_1 = arith.constant 0 : index
    %c0_2 = arith.constant 0 : index
    %1 = vector.load %arg2[%c0_1, %c0_2] : memref<25x64xbf16, #tpu.memory_space<vmem>>, vector<25x64xbf16>
    %cst = arith.constant dense<0.000000e+00> : vector<128x64xf32>
    %2 = tpu.matmul %0, %1, %cst {dimension_numbers = #tpu.dot_dimension_numbers<[1], [0], [0], [1], [0, 0, 1, 1], [], []>} : vector<128x25xbf16>, vector<25x64xbf16>, vector<128x64xf32> -> vector<128x64xf32>
    %c0_3 = arith.constant 0 : index
    %c0_4 = arith.constant 0 : index
    %3 = vector.load %arg3[%c0_3, %c0_4] : memref<1x64xf32, #tpu.memory_space<vmem>>, vector<1x64xf32>
    %4 = vector.broadcast %3 : vector<1x64xf32> to vector<128x64xf32>
    %5 = arith.mulf %2, %4 : vector<128x64xf32>
    %c0_5 = arith.constant 0 : index
    %c0_6 = arith.constant 0 : index
    %6 = vector.load %arg4[%c0_5, %c0_6] : memref<1x64xf32, #tpu.memory_space<vmem>>, vector<1x64xf32>
    %7 = vector.broadcast %6 : vector<1x64xf32> to vector<128x64xf32>
    %8 = arith.addf %5, %7 : vector<128x64xf32>
    %cst_7 = arith.constant 0.000000e+00 : f32
    %9 = vector.broadcast %cst_7 : f32 to vector<128x64xf32>
    %10 = arith.maximumf %8, %9 : vector<128x64xf32>
    %11 = arith.truncf %10 : vector<128x64xf32> to vector<128x64xbf16>
    %c0_8 = arith.constant 0 : index
    %c0_9 = arith.constant 0 : index
    %12 = vector.load %arg5[%c0_8, %c0_9] : memref<128x64xbf16, #tpu.memory_space<vmem>>, vector<128x64xbf16>
    tpu.vector_store %arg5[%c0_8, %c0_9], %11 {strides = array<i32>} : memref<128x64xbf16, #tpu.memory_space<vmem>>, vector<128x64xbf16>,
    return
  }
  func.func @transform_0(%arg0: i32) -> (i32, i32) {
    %c0_i32 = arith.constant 0 : i32
    %c0_i32_0 = arith.constant 0 : i32
    return %arg0, %c0_i32 : i32, i32
  }
  func.func @transform_1(%arg0: i32) -> (i32, i32) {
    %c0_i32 = arith.constant 0 : i32
    %c0_i32_0 = arith.constant 0 : i32
    %c0_i32_1 = arith.constant 0 : i32
    return %c0_i32, %c0_i32_0 : i32, i32
  }
  func.func @transform_2(%arg0: i32) -> (i32, i32) {
    %c0_i32 = arith.constant 0 : i32
    %c0_i32_0 = arith.constant 0 : i32
    %c0_i32_1 = arith.constant 0 : i32
    return %c0_i32, %c0_i32_0 : i32, i32
  }
  func.func @transform_3(%arg0: i32) -> (i32, i32) {
    %c0_i32 = arith.constant 0 : i32
    %c0_i32_0 = arith.constant 0 : i32
    %c0_i32_1 = arith.constant 0 : i32
    return %c0_i32, %c0_i32_0 : i32, i32
  }
  func.func @transform_4(%arg0: i32) -> (i32, i32) {
    %c0_i32 = arith.constant 0 : i32
    %c0_i32_0 = arith.constant 0 : i32
    return %arg0, %c0_i32 : i32, i32
  }
}

module attributes {stable_mosaic.version = 11 : i64} {
  func.func @_fused_tail_kernel(%arg0: i32, %arg1: memref<32x576xbf16, #tpu.memory_space<vmem>>, %arg2: memref<576x64xbf16, #tpu.memory_space<vmem>>, %arg3: memref<1x64xf32, #tpu.memory_space<vmem>>, %arg4: memref<1x64xf32, #tpu.memory_space<vmem>>, %arg5: memref<4x64x128xbf16, #tpu.memory_space<vmem>>, %arg6: memref<1x128xf32, #tpu.memory_space<vmem>>, %arg7: memref<2x128xf32, #tpu.memory_space<vmem>>) attributes {dimension_semantics = [#tpu.dimension_semantics<arbitrary>], iteration_bounds = array<i64: 1>, scalar_prefetch = 0 : i64, scratch_operands = 0 : i64, tpu.core_type = #tpu.core_type<tc>, window_params = [{pipeline_mode = #tpu.pipeline_mode<synchronous>, transform_indices = @transform_0, window_bounds = array<i64: 32, 576>}, {pipeline_mode = #tpu.pipeline_mode<synchronous>, transform_indices = @transform_1, window_bounds = array<i64: 576, 64>}, {pipeline_mode = #tpu.pipeline_mode<synchronous>, transform_indices = @transform_2, window_bounds = array<i64: 1, 64>}, {pipeline_mode = #tpu.pipeline_mode<synchronous>, transform_indices = @transform_3, window_bounds = array<i64: 1, 64>}, {pipeline_mode = #tpu.pipeline_mode<synchronous>, transform_indices = @transform_4, window_bounds = array<i64: 4, 64, 128>}, {pipeline_mode = #tpu.pipeline_mode<synchronous>, transform_indices = @transform_5, window_bounds = array<i64: 1, 128>}, {pipeline_mode = #tpu.pipeline_mode<synchronous>, transform_indices = @transform_6, window_bounds = array<i64: 2, 128>}]} {
    %c0 = arith.constant 0 : index
    %c0_0 = arith.constant 0 : index
    %0 = vector.load %arg1[%c0, %c0_0] : memref<32x576xbf16, #tpu.memory_space<vmem>>, vector<32x576xbf16>
    %c0_1 = arith.constant 0 : index
    %c0_2 = arith.constant 0 : index
    %1 = vector.load %arg2[%c0_1, %c0_2] : memref<576x64xbf16, #tpu.memory_space<vmem>>, vector<576x64xbf16>
    %cst = arith.constant dense<0.000000e+00> : vector<32x64xf32>
    %2 = tpu.matmul %0, %1, %cst {dimension_numbers = #tpu.dot_dimension_numbers<[1], [0], [0], [1], [0, 0, 1, 1], [], []>} : vector<32x576xbf16>, vector<576x64xbf16>, vector<32x64xf32> -> vector<32x64xf32>
    %c0_3 = arith.constant 0 : index
    %c0_4 = arith.constant 0 : index
    %3 = vector.load %arg3[%c0_3, %c0_4] : memref<1x64xf32, #tpu.memory_space<vmem>>, vector<1x64xf32>
    %4 = vector.broadcast %3 : vector<1x64xf32> to vector<32x64xf32>
    %5 = arith.mulf %2, %4 : vector<32x64xf32>
    %c0_5 = arith.constant 0 : index
    %c0_6 = arith.constant 0 : index
    %6 = vector.load %arg4[%c0_5, %c0_6] : memref<1x64xf32, #tpu.memory_space<vmem>>, vector<1x64xf32>
    %7 = vector.broadcast %6 : vector<1x64xf32> to vector<32x64xf32>
    %8 = arith.addf %5, %7 : vector<32x64xf32>
    %cst_7 = arith.constant 0.000000e+00 : f32
    %9 = vector.broadcast %cst_7 : f32 to vector<32x64xf32>
    %10 = arith.maximumf %8, %9 : vector<32x64xf32>
    %11 = vector.extract_strided_slice %10 {offsets = [0, 0], sizes = [8, 64], strides = [1, 1]} : vector<32x64xf32> to vector<8x64xf32>
    %12 = vector.extract_strided_slice %10 {offsets = [8, 0], sizes = [8, 64], strides = [1, 1]} : vector<32x64xf32> to vector<8x64xf32>
    %13 = arith.addf %11, %12 : vector<8x64xf32>
    %14 = vector.extract_strided_slice %10 {offsets = [16, 0], sizes = [8, 64], strides = [1, 1]} : vector<32x64xf32> to vector<8x64xf32>
    %15 = arith.addf %13, %14 : vector<8x64xf32>
    %16 = vector.extract_strided_slice %10 {offsets = [24, 0], sizes = [8, 64], strides = [1, 1]} : vector<32x64xf32> to vector<8x64xf32>
    %17 = arith.addf %15, %16 : vector<8x64xf32>
    %cst_8 = arith.constant 2.500000e-01 : f32
    %18 = vector.broadcast %cst_8 : f32 to vector<8x64xf32>
    %19 = arith.mulf %18, %17 : vector<8x64xf32>
    %cst_9 = arith.constant 0.000000e+00 : f32
    %20 = vector.broadcast %cst_9 : f32 to vector<2x128xf32>
    %21 = vector.extract_strided_slice %19 {offsets = [0, 0], sizes = [2, 64], strides = [1, 1]} : vector<8x64xf32> to vector<2x64xf32>
    %22 = arith.truncf %21 : vector<2x64xf32> to vector<2x64xbf16>
    %c0_10 = arith.constant 0 : index
    %c0_11 = arith.constant 0 : index
    %c0_12 = arith.constant 0 : index
    %23 = vector.load %arg5[%c0_10, %c0_11, %c0_12] : memref<4x64x128xbf16, #tpu.memory_space<vmem>>, vector<1x64x128xbf16>
    %24 = vector.shape_cast %23 : vector<1x64x128xbf16> to vector<64x128xbf16>
    %cst_13 = arith.constant dense<0.000000e+00> : vector<2x128xf32>
    %25 = tpu.matmul %22, %24, %cst_13 {dimension_numbers = #tpu.dot_dimension_numbers<[1], [0], [0], [1], [0, 0, 1, 1], [], []>} : vector<2x64xbf16>, vector<64x128xbf16>, vector<2x128xf32> -> vector<2x128xf32>
    %26 = arith.addf %20, %25 : vector<2x128xf32>
    %27 = vector.extract_strided_slice %19 {offsets = [2, 0], sizes = [2, 64], strides = [1, 1]} : vector<8x64xf32> to vector<2x64xf32>
    %28 = arith.truncf %27 : vector<2x64xf32> to vector<2x64xbf16>
    %c1 = arith.constant 1 : index
    %c0_14 = arith.constant 0 : index
    %c0_15 = arith.constant 0 : index
    %29 = vector.load %arg5[%c1, %c0_14, %c0_15] : memref<4x64x128xbf16, #tpu.memory_space<vmem>>, vector<1x64x128xbf16>
    %30 = vector.shape_cast %29 : vector<1x64x128xbf16> to vector<64x128xbf16>
    %cst_16 = arith.constant dense<0.000000e+00> : vector<2x128xf32>
    %31 = tpu.matmul %28, %30, %cst_16 {dimension_numbers = #tpu.dot_dimension_numbers<[1], [0], [0], [1], [0, 0, 1, 1], [], []>} : vector<2x64xbf16>, vector<64x128xbf16>, vector<2x128xf32> -> vector<2x128xf32>
    %32 = arith.addf %26, %31 : vector<2x128xf32>
    %33 = vector.extract_strided_slice %19 {offsets = [4, 0], sizes = [2, 64], strides = [1, 1]} : vector<8x64xf32> to vector<2x64xf32>
    %34 = arith.truncf %33 : vector<2x64xf32> to vector<2x64xbf16>
    %c2 = arith.constant 2 : index
    %c0_17 = arith.constant 0 : index
    %c0_18 = arith.constant 0 : index
    %35 = vector.load %arg5[%c2, %c0_17, %c0_18] : memref<4x64x128xbf16, #tpu.memory_space<vmem>>, vector<1x64x128xbf16>
    %36 = vector.shape_cast %35 : vector<1x64x128xbf16> to vector<64x128xbf16>
    %cst_19 = arith.constant dense<0.000000e+00> : vector<2x128xf32>
    %37 = tpu.matmul %34, %36, %cst_19 {dimension_numbers = #tpu.dot_dimension_numbers<[1], [0], [0], [1], [0, 0, 1, 1], [], []>} : vector<2x64xbf16>, vector<64x128xbf16>, vector<2x128xf32> -> vector<2x128xf32>
    %38 = arith.addf %32, %37 : vector<2x128xf32>
    %39 = vector.extract_strided_slice %19 {offsets = [6, 0], sizes = [2, 64], strides = [1, 1]} : vector<8x64xf32> to vector<2x64xf32>
    %40 = arith.truncf %39 : vector<2x64xf32> to vector<2x64xbf16>
    %c3 = arith.constant 3 : index
    %c0_20 = arith.constant 0 : index
    %c0_21 = arith.constant 0 : index
    %41 = vector.load %arg5[%c3, %c0_20, %c0_21] : memref<4x64x128xbf16, #tpu.memory_space<vmem>>, vector<1x64x128xbf16>
    %42 = vector.shape_cast %41 : vector<1x64x128xbf16> to vector<64x128xbf16>
    %cst_22 = arith.constant dense<0.000000e+00> : vector<2x128xf32>
    %43 = tpu.matmul %40, %42, %cst_22 {dimension_numbers = #tpu.dot_dimension_numbers<[1], [0], [0], [1], [0, 0, 1, 1], [], []>} : vector<2x64xbf16>, vector<64x128xbf16>, vector<2x128xf32> -> vector<2x128xf32>
    %44 = arith.addf %38, %43 : vector<2x128xf32>
    %c0_23 = arith.constant 0 : index
    %c0_24 = arith.constant 0 : index
    %45 = vector.load %arg6[%c0_23, %c0_24] : memref<1x128xf32, #tpu.memory_space<vmem>>, vector<1x128xf32>
    %46 = vector.broadcast %45 : vector<1x128xf32> to vector<2x128xf32>
    %47 = arith.addf %44, %46 : vector<2x128xf32>
    %c0_25 = arith.constant 0 : index
    %c0_26 = arith.constant 0 : index
    %48 = vector.load %arg7[%c0_25, %c0_26] : memref<2x128xf32, #tpu.memory_space<vmem>>, vector<2x128xf32>
    tpu.vector_store %arg7[%c0_25, %c0_26], %47 {strides = array<i32>} : memref<2x128xf32, #tpu.memory_space<vmem>>, vector<2x128xf32>,
    return
  }
  func.func @transform_0(%arg0: i32) -> (i32, i32) {
    %c0_i32 = arith.constant 0 : i32
    %c0_i32_0 = arith.constant 0 : i32
    %c0_i32_1 = arith.constant 0 : i32
    return %c0_i32, %c0_i32_0 : i32, i32
  }
  func.func @transform_1(%arg0: i32) -> (i32, i32) {
    %c0_i32 = arith.constant 0 : i32
    %c0_i32_0 = arith.constant 0 : i32
    %c0_i32_1 = arith.constant 0 : i32
    return %c0_i32, %c0_i32_0 : i32, i32
  }
  func.func @transform_2(%arg0: i32) -> (i32, i32) {
    %c0_i32 = arith.constant 0 : i32
    %c0_i32_0 = arith.constant 0 : i32
    %c0_i32_1 = arith.constant 0 : i32
    return %c0_i32, %c0_i32_0 : i32, i32
  }
  func.func @transform_3(%arg0: i32) -> (i32, i32) {
    %c0_i32 = arith.constant 0 : i32
    %c0_i32_0 = arith.constant 0 : i32
    %c0_i32_1 = arith.constant 0 : i32
    return %c0_i32, %c0_i32_0 : i32, i32
  }
  func.func @transform_4(%arg0: i32) -> (i32, i32, i32) {
    %c0_i32 = arith.constant 0 : i32
    %c0_i32_0 = arith.constant 0 : i32
    %c0_i32_1 = arith.constant 0 : i32
    %c0_i32_2 = arith.constant 0 : i32
    return %c0_i32, %c0_i32_0, %c0_i32_1 : i32, i32, i32
  }
  func.func @transform_5(%arg0: i32) -> (i32, i32) {
    %c0_i32 = arith.constant 0 : i32
    %c0_i32_0 = arith.constant 0 : i32
    %c0_i32_1 = arith.constant 0 : i32
    return %c0_i32, %c0_i32_0 : i32, i32
  }
  func.func @transform_6(%arg0: i32) -> (i32, i32) {
    %c0_i32 = arith.constant 0 : i32
    %c0_i32_0 = arith.constant 0 : i32
    %c0_i32_1 = arith.constant 0 : i32
    return %c0_i32, %c0_i32_0 : i32, i32
  }
}

</mosaic_0001>

<llo_original>
// kernel: student_s_forward.2
$region0: #{student_s_forward.2}
  #allocation0 [shape = 'u32[]', space=smem, size = 0x4, offset = 0x4, fixed_abs, tag = 'smem constant byte address 0x4 - core index']
  #allocation1 [shape = 'u32[144,128]{1,0:T(1,128)}', space=vmem, size = 0x12000, scoped, tag = 'internal scratch']
  %s0 = inlined_call_operand.vmem [shape: bf16[128,25], index: 0, kind: input, shape index: {}]
  %s1 = inlined_call_operand.vmem [shape: bf16[25,64], index: 1, kind: input, shape index: {}]
  %s2 = inlined_call_operand.vmem [shape: f32[1,64], index: 2, kind: input, shape index: {}]
  %s3 = inlined_call_operand.vmem [shape: f32[1,64], index: 3, kind: input, shape index: {}]
  %s4 = inlined_call_operand.vmem [shape: bf16[128,64], index: 4, kind: output, shape index: {}]
  %s5 = sld [smem:[#allocation0]]
  $region26: #{student_s_forward.2} parent=0
    _
  %s7 = ssub.s32 1, %s5
  %s8 = scalar_select 0, %s7, %s5
  // Predicated region
  $region2: #{student_s_forward.2} parent=0 // pred_check
    _
  $region3: #{student_s_forward.2} parent=0 // pred_check_branch
    %10 = sbr.rel (0) target = $region5
  $region4: #{student_s_forward.2} parent=0 // pred_region
    _
  $region5: #{student_s_forward.2} parent=0 // pred_fallthru
    _
  // Predicated region
  $region6: #{student_s_forward.2} parent=0 // pred_check
    _
  $region7: #{student_s_forward.2} parent=0 // pred_check_branch
    %12 = sbr.rel (0) target = $region9
  $region8: #{student_s_forward.2} parent=0 // pred_region
    _
  $region9: #{student_s_forward.2} parent=0 // pred_fallthru
    _
  // Predicated region
  $region10: #{student_s_forward.2} parent=0 // pred_check
    _
  $region11: #{student_s_forward.2} parent=0 // pred_check_branch
    %14 = sbr.rel (0) target = $region13
  $region12: #{student_s_forward.2} parent=0 // pred_region
    _
  $region13: #{student_s_forward.2} parent=0 // pred_fallthru
    _
  // Predicated region
  $region14: #{student_s_forward.2} parent=0 // pred_check
    _
  $region15: #{student_s_forward.2} parent=0 // pred_check_branch
    %16 = sbr.rel (0) target = $region17
  $region16: #{student_s_forward.2} parent=0 // pred_region
    _
  $region17: #{student_s_forward.2} parent=0 // pred_fallthru
    _
  %v18 = vld [vmem:[%s0] sm:$0xf]
  %v19 = vld [vmem:[%s0 + $0x4] sm:$0xf]
  %v20 = vld [vmem:[%s0 + $0x8] sm:$0xf]
  %v21 = vld [vmem:[%s0 + $0xc] sm:$0xf]
  %v22 = vld [vmem:[%s0 + $0x10] sm:$0xf]
  %v23 = vld [vmem:[%s0 + $0x14] sm:$0xf]
  %v24 = vld [vmem:[%s0 + $0x18] sm:$0xf]
  %v25 = vld [vmem:[%s0 + $0x1c] sm:$0xf]
  %v26 = vld [vmem:[%s0 + $0x20] sm:$0xf]
  %v27 = vld [vmem:[%s0 + $0x24] sm:$0xf]
  %v28 = vld [vmem:[%s0 + $0x28] sm:$0xf]
  %v29 = vld [vmem:[%s0 + $0x2c] sm:$0xf]
  %v30 = vld [vmem:[%s0 + $0x30] sm:$0xf]
  %v31 = vld [vmem:[%s0 + $0x34] sm:$0xf]
  %v32 = vld [vmem:[%s0 + $0x38] sm:$0xf]
  %v33 = vld [vmem:[%s0 + $0x3c] sm:$0xf]
  %v34 = vld [vmem:[%s1] sm:$0xf]
  %v35 = vld [vmem:[%s1 + $0x4] sm:$0xf]
  %v36 = vld [vmem:[%s1 + $0x8] sm:$0xf]
  %v37 = vld [vmem:[%s1 + $0xc] sm:$0x1]
  %v54 = vunpack.c.l.b16 %v18
  %v55 = vunpack.c.l.b16 %v19
  %v56 = vunpack.c.l.b16 %v20
  %v57 = vunpack.c.l.b16 %v21
  %v58 = vunpack.c.l.b16 %v22
  %v59 = vunpack.c.l.b16 %v23
  %v60 = vunpack.c.l.b16 %v24
  %v61 = vunpack.c.l.b16 %v25
  %v62 = vunpack.c.l.b16 %v26
  %v63 = vunpack.c.l.b16 %v27
  %v64 = vunpack.c.l.b16 %v28
  %v65 = vunpack.c.l.b16 %v29
  %v66 = vunpack.c.l.b16 %v30
  %v67 = vunpack.c.l.b16 %v31
  %v68 = vunpack.c.l.b16 %v32
  %v69 = vunpack.c.l.b16 %v33
  %v70 = vpack.c.b16 %v55, %v54
  %v71 = vpack.c.b16 %v57, %v56
  %v72 = vpack.c.b16 %v59, %v58
  %v73 = vpack.c.b16 %v61, %v60
  %v74 = vpack.c.b16 %v63, %v62
  %v75 = vpack.c.b16 %v65, %v64
  %v76 = vpack.c.b16 %v67, %v66
  %v77 = vpack.c.b16 %v69, %v68
  %v82 = vunpack.c.l.b16 %v34
  %v83 = vunpack.c.l.b16 %v35
  %v84 = vunpack.c.l.b16 %v36
  %v85 = vunpack.c.l.b16 %v37
  %v86 = vpack.c.b16 %v83, %v82
  %v87 = vpack.c.b16 %v85, %v84
  %vm89 = vcmask 203776
  %v91 = vsel %vm89, %v70, 0
  %v94 = vsel %vm89, %v71, 0
  %v97 = vsel %vm89, %v72, 0
  %v100 = vsel %vm89, %v73, 0
  %v103 = vsel %vm89, %v74, 0
  %v106 = vsel %vm89, %v75, 0
  %v109 = vsel %vm89, %v76, 0
  %v112 = vsel %vm89, %v77, 0
  %vm114 = vcmask 1043456
  %vm115 = vcmask 1044480
  %v116 = vsel %vm114, 4294967295, 65535
  %v117 = vsel %vm115, %v116, 0
  %v119 = vand.u32 %v87, %v117
  %121 = vmatprep.subr.bf16.mxu0 0
  %122 = vmatpush1.bf16.msra.mxu0 %v86
  %123 = vmatprep.subr.bf16.mxu0 0
  %124 = vmatpush1.bf16.msra.mxu0 %v119
  %125 = vmatprep.subr.bf16.mxu0 0
  %126 = vmatpush1.bf16.msra.mxu0 0
  %127 = vmatprep.subr.bf16.mxu0 0
  %128 = vmatpush1.bf16.msra.mxu0 0
  %129 = vmatprep.subr.bf16.mxu0 0
  %130 = vmatpush1.bf16.msra.mxu0 0
  %131 = vmatprep.subr.bf16.mxu0 0
  %132 = vmatpush1.bf16.msra.mxu0 0
  %133 = vmatprep.subr.bf16.mxu0 0
  %134 = vmatpush1.bf16.msra.mxu0 0
  %135 = vmatprep.subr.bf16.mxu0 0
  %136 = vmatpush1.bf16.msra.mxu0 0
  %137 = vmatprep.subr.bf16.mxu0 0
  %138 = vmatpush1.bf16.msra.mxu0 0
  %139 = vmatprep.subr.bf16.mxu0 0
  %140 = vmatpush1.bf16.msra.mxu0 0
  %141 = vmatprep.subr.bf16.mxu0 0
  %142 = vmatpush1.bf16.msra.mxu0 0
  %143 = vmatprep.subr.bf16.mxu0 0
  %144 = vmatpush1.bf16.msra.mxu0 0
  %145 = vmatprep.subr.bf16.mxu0 0
  %146 = vmatpush1.bf16.msra.mxu0 0
  %147 = vmatprep.subr.bf16.mxu0 0
  %148 = vmatpush1.bf16.msra.mxu0 0
  %149 = vmatprep.subr.bf16.mxu0 0
  %150 = vmatpush1.bf16.msra.mxu0 0
  %151 = vmatprep.subr.bf16.mxu0 0
  %152 = vmatpush1.bf16.msra.mxu0 0
  %153 = vmatprep.mubr.bf16.mxu0 0
  %154 = vmatmul.mubr.bf16.gmra.mrb[0].mxu0 %v91
  %v155 = vpop.f32.mrb[0].mxu0
  %v156 = vadd.f32 0.0, %v155
  %v157 = vpop.f32.mrb[0].mxu0
  %v158 = vpop.f32.mrb[0].mxu0
  %v159 = vadd.f32 0.0, %v158
  %v160 = vpop.f32.mrb[0].mxu0
  %161 = vmatprep.mubr.bf16.mxu0 0
  %162 = vmatmul.mubr.bf16.gmra.mrb[0].mxu0 %v94
  %v163 = vpop.f32.mrb[0].mxu0
  %v164 = vadd.f32 0.0, %v163
  %v165 = vpop.f32.mrb[0].mxu0
  %v166 = vpop.f32.mrb[0].mxu0
  %v167 = vadd.f32 0.0, %v166
  %v168 = vpop.f32.mrb[0].mxu0
  %169 = vmatprep.mubr.bf16.mxu0 0
  %170 = vmatmul.mubr.bf16.gmra.mrb[0].mxu0 %v97
  %v171 = vpop.f32.mrb[0].mxu0
  %v172 = vadd.f32 0.0, %v171
  %v173 = vpop.f32.mrb[0].mxu0
  %v174 = vpop.f32.mrb[0].mxu0
  %v175 = vadd.f32 0.0, %v174
  %v176 = vpop.f32.mrb[0].mxu0
  %177 = vmatprep.mubr.bf16.mxu0 0
  %178 = vmatmul.mubr.bf16.gmra.mrb[0].mxu0 %v100
  %v179 = vpop.f32.mrb[0].mxu0
  %v180 = vadd.f32 0.0, %v179
  %v181 = vpop.f32.mrb[0].mxu0
  %v182 = vpop.f32.mrb[0].mxu0
  %v183 = vadd.f32 0.0, %v182
  %v184 = vpop.f32.mrb[0].mxu0
  %185 = vmatprep.mubr.bf16.mxu0 0
  %186 = vmatmul.mubr.bf16.gmra.mrb[0].mxu0 %v103
  %v187 = vpop.f32.mrb[0].mxu0
  %v188 = vadd.f32 0.0, %v187
  %v189 = vpop.f32.mrb[0].mxu0
  %v190 = vpop.f32.mrb[0].mxu0
  %v191 = vadd.f32 0.0, %v190
  %v192 = vpop.f32.mrb[0].mxu0
  %193 = vmatprep.mubr.bf16.mxu0 0
  %194 = vmatmul.mubr.bf16.gmra.mrb[0].mxu0 %v106
  %v195 = vpop.f32.mrb[0].mxu0
  %v196 = vadd.f32 0.0, %v195
  %v197 = vpop.f32.mrb[0].mxu0
  %v198 = vpop.f32.mrb[0].mxu0
  %v199 = vadd.f32 0.0, %v198
  %v200 = vpop.f32.mrb[0].mxu0
  %201 = vmatprep.mubr.bf16.mxu0 0
  %202 = vmatmul.mubr.bf16.gmra.mrb[0].mxu0 %v109
  %v203 = vpop.f32.mrb[0].mxu0
  %v204 = vadd.f32 0.0, %v203
  %v205 = vpop.f32.mrb[0].mxu0
  %v206 = vpop.f32.mrb[0].mxu0
  %v207 = vadd.f32 0.0, %v206
  %v208 = vpop.f32.mrb[0].mxu0
  %209 = vmatprep.mubr.bf16.mxu0 0
  %210 = vmatmul.mubr.bf16.gmra.mrb[0].mxu0 %v112
  %v211 = vpop.f32.mrb[0].mxu0
  %v212 = vadd.f32 0.0, %v211
  %v213 = vpop.f32.mrb[0].mxu0
  %v214 = vpop.f32.mrb[0].mxu0
  %v215 = vadd.f32 0.0, %v214
  %v216 = vpop.f32.mrb[0].mxu0
  %217 = vdwg.mxu0
  %v218 = vld [vmem:[%s2] sm:$0x1]
  %v220 = vlaneseq
  %v221 = vshrl.u32 %v220, 7
  %v222 = vsub.s32 0, %v221
  %v223 = vrot.slane %v218, %v222
  %v225 = vmul.f32 %v156, %v223
  %v226 = vmul.f32 %v159, %v223
  %v227 = vmul.f32 %v164, %v223
  %v228 = vmul.f32 %v167, %v223
  %v229 = vmul.f32 %v172, %v223
  %v230 = vmul.f32 %v175, %v223
  %v231 = vmul.f32 %v180, %v223
  %v232 = vmul.f32 %v183, %v223
  %v233 = vmul.f32 %v188, %v223
  %v234 = vmul.f32 %v191, %v223
  %v235 = vmul.f32 %v196, %v223
  %v236 = vmul.f32 %v199, %v223
  %v237 = vmul.f32 %v204, %v223
  %v238 = vmul.f32 %v207, %v223
  %v239 = vmul.f32 %v212, %v223
  %v240 = vmul.f32 %v215, %v223
  %v241 = vld [vmem:[%s3] sm:$0x1]
  %v243 = vlaneseq
  %v244 = vshrl.u32 %v243, 7
  %v245 = vsub.s32 0, %v244
  %v246 = vrot.slane %v241, %v245
  %v248 = vadd.f32 %v225, %v246
  %v249 = vadd.f32 %v226, %v246
  %v250 = vadd.f32 %v227, %v246
  %v251 = vadd.f32 %v228, %v246
  %v252 = vadd.f32 %v229, %v246
  %v253 = vadd.f32 %v230, %v246
  %v254 = vadd.f32 %v231, %v246
  %v255 = vadd.f32 %v232, %v246
  %v256 = vadd.f32 %v233, %v246
  %v257 = vadd.f32 %v234, %v246
  %v258 = vadd.f32 %v235, %v246
  %v259 = vadd.f32 %v236, %v246
  %v260 = vadd.f32 %v237, %v246
  %v261 = vadd.f32 %v238, %v246
  %v262 = vadd.f32 %v239, %v246
  %v263 = vadd.f32 %v240, %v246
  %v264 = vmax.f32 %v248, 0.0
  %v265 = vmax.f32 %v249, 0.0
  %v266 = vmax.f32 %v250, 0.0
  %v267 = vmax.f32 %v251, 0.0
  %v268 = vmax.f32 %v252, 0.0
  %v269 = vmax.f32 %v253, 0.0
  %v270 = vmax.f32 %v254, 0.0
  %v271 = vmax.f32 %v255, 0.0
  %v272 = vmax.f32 %v256, 0.0
  %v273 = vmax.f32 %v257, 0.0
  %v274 = vmax.f32 %v258, 0.0
  %v275 = vmax.f32 %v259, 0.0
  %v276 = vmax.f32 %v260, 0.0
  %v277 = vmax.f32 %v261, 0.0
  %v278 = vmax.f32 %v262, 0.0
  %v279 = vmax.f32 %v263, 0.0
  %v280 = vpack.c.bf16 %v265, %v264
  %v281 = vpack.c.bf16 %v267, %v266
  %v282 = vpack.c.bf16 %v269, %v268
  %v283 = vpack.c.bf16 %v271, %v270
  %v284 = vpack.c.bf16 %v273, %v272
  %v285 = vpack.c.bf16 %v275, %v274
  %v286 = vpack.c.bf16 %v277, %v276
  %v287 = vpack.c.bf16 %v279, %v278
  %v296 = vunpack.c.l.b16 %v280
  %v297 = vunpack.c.h.b16 %v280
  %v298 = vunpack.c.l.b16 %v281
  %v299 = vunpack.c.h.b16 %v281
  %v300 = vunpack.c.l.b16 %v282
  %v301 = vunpack.c.h.b16 %v282
  %v302 = vunpack.c.l.b16 %v283
  %v303 = vunpack.c.h.b16 %v283
  %v304 = vunpack.c.l.b16 %v284
  %v305 = vunpack.c.h.b16 %v284
  %v306 = vunpack.c.l.b16 %v285
  %v307 = vunpack.c.h.b16 %v285
  %v308 = vunpack.c.l.b16 %v286
  %v309 = vunpack.c.h.b16 %v286
  %v310 = vunpack.c.l.b16 %v287
  %v311 = vunpack.c.h.b16 %v287
  %v312 = vpack.c.b16 %v296, %v296
  %v313 = vpack.c.b16 %v297, %v297
  %v314 = vpack.c.b16 %v298, %v298
  %v315 = vpack.c.b16 %v299, %v299
  %v316 = vpack.c.b16 %v300, %v300
  %v317 = vpack.c.b16 %v301, %v301
  %v318 = vpack.c.b16 %v302, %v302
  %v319 = vpack.c.b16 %v303, %v303
  %v320 = vpack.c.b16 %v304, %v304
  %v321 = vpack.c.b16 %v305, %v305
  %v322 = vpack.c.b16 %v306, %v306
  %v323 = vpack.c.b16 %v307, %v307
  %v324 = vpack.c.b16 %v308, %v308
  %v325 = vpack.c.b16 %v309, %v309
  %v326 = vpack.c.b16 %v310, %v310
  %v327 = vpack.c.b16 %v311, %v311
  %vm344 = vcmask 519168
  %345 = vst.msk [vmem:[%s4] sm:$0xf] %vm344, %v312
  %346 = vst.msk [vmem:[%s4 + $0x4] sm:$0xf] %vm344, %v313
  %347 = vst.msk [vmem:[%s4 + $0x8] sm:$0xf] %vm344, %v314
  %348 = vst.msk [vmem:[%s4 + $0xc] sm:$0xf] %vm344, %v315
  %349 = vst.msk [vmem:[%s4 + $0x10] sm:$0xf] %vm344, %v316
  %350 = vst.msk [vmem:[%s4 + $0x14] sm:$0xf] %vm344, %v317
  %351 = vst.msk [vmem:[%s4 + $0x18] sm:$0xf] %vm344, %v318
  %352 = vst.msk [vmem:[%s4 + $0x1c] sm:$0xf] %vm344, %v319
  %353 = vst.msk [vmem:[%s4 + $0x20] sm:$0xf] %vm344, %v320
  %354 = vst.msk [vmem:[%s4 + $0x24] sm:$0xf] %vm344, %v321
  %355 = vst.msk [vmem:[%s4 + $0x28] sm:$0xf] %vm344, %v322
  %356 = vst.msk [vmem:[%s4 + $0x2c] sm:$0xf] %vm344, %v323
  %357 = vst.msk [vmem:[%s4 + $0x30] sm:$0xf] %vm344, %v324
  %358 = vst.msk [vmem:[%s4 + $0x34] sm:$0xf] %vm344, %v325
  %359 = vst.msk [vmem:[%s4 + $0x38] sm:$0xf] %vm344, %v326
  %360 = vst.msk [vmem:[%s4 + $0x3c] sm:$0xf] %vm344, %v327
  // Predicated region
  $region18: #{student_s_forward.2} parent=0 // pred_check
    _
  $region19: #{student_s_forward.2} parent=0 // pred_check_branch
    %362 = sbr.rel (0) target = $region21
  $region20: #{student_s_forward.2} parent=0 // pred_region
    _
  $region21: #{student_s_forward.2} parent=0 // pred_fallthru
    _
  // Predicated region
  $region22: #{student_s_forward.2} parent=0 // pred_check
    _
  $region23: #{student_s_forward.2} parent=0 // pred_check_branch
    %364 = sbr.rel (0) target = $region25
  $region24: #{student_s_forward.2} parent=0 // pred_region
    _
  $region25: #{student_s_forward.2} parent=0 // pred_fallthru
    _

// kernel: student_s_forward.3
$region0: #{student_s_forward.3}
  #allocation0 [shape = 'u32[]', space=smem, size = 0x4, offset = 0x4, fixed_abs, tag = 'smem constant byte address 0x4 - core index']
  #allocation1 [shape = 'u32[144,128]{1,0:T(1,128)}', space=vmem, size = 0x12000, scoped, tag = 'internal scratch']
  %s0 = inlined_call_operand.vmem [shape: bf16[32,576], index: 0, kind: input, shape index: {}]
  %s1 = inlined_call_operand.vmem [shape: bf16[576,64], index: 1, kind: input, shape index: {}]
  %s2 = inlined_call_operand.vmem [shape: f32[1,64], index: 2, kind: input, shape index: {}]
  %s3 = inlined_call_operand.vmem [shape: f32[1,64], index: 3, kind: input, shape index: {}]
  %s4 = inlined_call_operand.vmem [shape: bf16[4,64,128], index: 4, kind: input, shape index: {}]
  %s5 = inlined_call_operand.vmem [shape: f32[1,128], index: 5, kind: input, shape index: {}]
  %s6 = inlined_call_operand.hbm [shape: f32[2,128], index: 6, kind: output, shape index: {}]
  %s7 = sld [smem:[#allocation0]]
  $region34: #{student_s_forward.3} parent=0
    _
  %s9 = ssub.s32 1, %s7
  %s10 = scalar_select 0, %s9, %s7
  $region1: #{student_s_forward.3} parent=0
    #allocation2 [shape = 'u8[1024]{0}', space=vmem, size = 0x400, scoped, tag = 'output window, operand 0, single buffered']
    #allocation3 [shape = 's32[1]{0}', space=sflag, size = 0x4, scoped, tag = 'scoped memory for student_s_forward.3']
    %11 = vsyncpa [#allocation3], 0
    // Predicated region
    $region2: #{student_s_forward.3} parent=1 // pred_check
      _
    $region3: #{student_s_forward.3} parent=1 // pred_check_branch
      %13 = sbr.rel (0) target = $region5
    $region4: #{student_s_forward.3} parent=1 // pred_region
      _
    $region5: #{student_s_forward.3} parent=1 // pred_fallthru
      _
    // Predicated region
    $region6: #{student_s_forward.3} parent=1 // pred_check
      _
    $region7: #{student_s_forward.3} parent=1 // pred_check_branch
      %15 = sbr.rel (0) target = $region9
    $region8: #{student_s_forward.3} parent=1 // pred_region
      _
    $region9: #{student_s_forward.3} parent=1 // pred_fallthru
      _
    // Predicated region
    $region10: #{student_s_forward.3} parent=1 // pred_check
      _
    $region11: #{student_s_forward.3} parent=1 // pred_check_branch
      %17 = sbr.rel (0) target = $region13
    $region12: #{student_s_forward.3} parent=1 // pred_region
      _
    $region13: #{student_s_forward.3} parent=1 // pred_fallthru
      _
    // Predicated region
    $region14: #{student_s_forward.3} parent=1 // pred_check
      _
    $region15: #{student_s_forward.3} parent=1 // pred_check_branch
      %19 = sbr.rel (0) target = $region17
    $region16: #{student_s_forward.3} parent=1 // pred_region
      _
    $region17: #{student_s_forward.3} parent=1 // pred_fallthru
      _
    // Predicated region
    $region18: #{student_s_forward.3} parent=1 // pred_check
      _
    $region19: #{student_s_forward.3} parent=1 // pred_check_branch
      %21 = sbr.rel (0) target = $region21
    $region20: #{student_s_forward.3} parent=1 // pred_region
      _
    $region21: #{student_s_forward.3} parent=1 // pred_fallthru
      _
    // Predicated region
    $region22: #{student_s_forward.3} parent=1 // pred_check
      _
    $region23: #{student_s_forward.3} parent=1 // pred_check_branch
      %23 = sbr.rel (0) target = $region25
    $region24: #{student_s_forward.3} parent=1 // pred_region
      _
    $region25: #{student_s_forward.3} parent=1 // pred_fallthru
      _
    %v25 = vld [vmem:[%s0] sm:$0xff]
    %v26 = vld [vmem:[%s0 + $0x8] sm:$0xff]
    %v27 = vld [vmem:[%s0 + $0x10] sm:$0xf]
    %v28 = vld [vmem:[%s0 + $0x14] sm:$0xff]
    %v29 = vld [vmem:[%s0 + $0x1c] sm:$0xff]
    %v30 = vld [vmem:[%s0 + $0x24] sm:$0xf]
    %v31 = vld [vmem:[%s0 + $0x28] sm:$0xff]
    %v32 = vld [vmem:[%s0 + $0x30] sm:$0xff]
    %v33 = vld [vmem:[%s0 + $0x38] sm:$0xf]
    %v34 = vld [vmem:[%s0 + $0x3c] sm:$0xff]
    %v35 = vld [vmem:[%s0 + $0x44] sm:$0xff]
    %v36 = vld [vmem:[%s0 + $0x4c] sm:$0xf]
    %v37 = vld [vmem:[%s1] sm:$0xf]
    %v38 = vld [vmem:[%s1 + $0x4] sm:$0xf]
    %v39 = vld [vmem:[%s1 + $0x8] sm:$0xf]
    %v40 = vld [vmem:[%s1 + $0xc] sm:$0xf]
    %v41 = vld [vmem:[%s1 + $0x10] sm:$0xf]
    %v42 = vld [vmem:[%s1 + $0x14] sm:$0xf]
    %v43 = vld [vmem:[%s1 + $0x18] sm:$0xf]
    %v44 = vld [vmem:[%s1 + $0x1c] sm:$0xf]
    %v45 = vld [vmem:[%s1 + $0x20] sm:$0xf]
    %v46 = vld [vmem:[%s1 + $0x24] sm:$0xf]
    %v47 = vld [vmem:[%s1 + $0x28] sm:$0xf]
    %v48 = vld [vmem:[%s1 + $0x2c] sm:$0xf]
    %v49 = vld [vmem:[%s1 + $0x30] sm:$0xf]
    %v50 = vld [vmem:[%s1 + $0x34] sm:$0xf]
    %v51 = vld [vmem:[%s1 + $0x38] sm:$0xf]
    %v52 = vld [vmem:[%s1 + $0x3c] sm:$0xf]
    %v53 = vld [vmem:[%s1 + $0x40] sm:$0xf]
    %v54 = vld [vmem:[%s1 + $0x44] sm:$0xf]
    %v55 = vld [vmem:[%s1 + $0x48] sm:$0xf]
    %v56 = vld [vmem:[%s1 + $0x4c] sm:$0xf]
    %v57 = vld [vmem:[%s1 + $0x50] sm:$0xf]
    %v58 = vld [vmem:[%s1 + $0x54] sm:$0xf]
    %v59 = vld [vmem:[%s1 + $0x58] sm:$0xf]
    %v60 = vld [vmem:[%s1 + $0x5c] sm:$0xf]
    %v61 = vld [vmem:[%s1 + $0x60] sm:$0xf]
    %v62 = vld [vmem:[%s1 + $0x64] sm:$0xf]
    %v63 = vld [vmem:[%s1 + $0x68] sm:$0xf]
    %v64 = vld [vmem:[%s1 + $0x6c] sm:$0xf]
    %v65 = vld [vmem:[%s1 + $0x70] sm:$0xf]
    %v66 = vld [vmem:[%s1 + $0x74] sm:$0xf]
    %v67 = vld [vmem:[%s1 + $0x78] sm:$0xf]
    %v68 = vld [vmem:[%s1 + $0x7c] sm:$0xf]
    %v69 = vld [vmem:[%s1 + $0x80] sm:$0xf]
    %v70 = vld [vmem:[%s1 + $0x84] sm:$0xf]
    %v71 = vld [vmem:[%s1 + $0x88] sm:$0xf]
    %v72 = vld [vmem:[%s1 + $0x8c] sm:$0xf]
    %v73 = vld [vmem:[%s1 + $0x90] sm:$0xf]
    %v74 = vld [vmem:[%s1 + $0x94] sm:$0xf]
    %v75 = vld [vmem:[%s1 + $0x98] sm:$0xf]
    %v76 = vld [vmem:[%s1 + $0x9c] sm:$0xf]
    %v77 = vld [vmem:[%s1 + $0xa0] sm:$0xf]
    %v78 = vld [vmem:[%s1 + $0xa4] sm:$0xf]
    %v79 = vld [vmem:[%s1 + $0xa8] sm:$0xf]
    %v80 = vld [vmem:[%s1 + $0xac] sm:$0xf]
    %v81 = vld [vmem:[%s1 + $0xb0] sm:$0xf]
    %v82 = vld [vmem:[%s1 + $0xb4] sm:$0xf]
    %v83 = vld [vmem:[%s1 + $0xb8] sm:$0xf]
    %v84 = vld [vmem:[%s1 + $0xbc] sm:$0xf]
    %v85 = vld [vmem:[%s1 + $0xc0] sm:$0xf]
    %v86 = vld [vmem:[%s1 + $0xc4] sm:$0xf]
    %v87 = vld [vmem:[%s1 + $0xc8] sm:$0xf]
    %v88 = vld [vmem:[%s1 + $0xcc] sm:$0xf]
    %v89 = vld [vmem:[%s1 + $0xd0] sm:$0xf]
    %v90 = vld [vmem:[%s1 + $0xd4] sm:$0xf]
    %v91 = vld [vmem:[%s1 + $0xd8] sm:$0xf]
    %v92 = vld [vmem:[%s1 + $0xdc] sm:$0xf]
    %v93 = vld [vmem:[%s1 + $0xe0] sm:$0xf]
    %v94 = vld [vmem:[%s1 + $0xe4] sm:$0xf]
    %v95 = vld [vmem:[%s1 + $0xe8] sm:$0xf]
    %v96 = vld [vmem:[%s1 + $0xec] sm:$0xf]
    %v97 = vld [vmem:[%s1 + $0xf0] sm:$0xf]
    %v98 = vld [vmem:[%s1 + $0xf4] sm:$0xf]
    %v99 = vld [vmem:[%s1 + $0xf8] sm:$0xf]
    %v100 = vld [vmem:[%s1 + $0xfc] sm:$0xf]
    %v101 = vld [vmem:[%s1 + $0x100] sm:$0xf]
    %v102 = vld [vmem:[%s1 + $0x104] sm:$0xf]
    %v103 = vld [vmem:[%s1 + $0x108] sm:$0xf]
    %v104 = vld [vmem:[%s1 + $0x10c] sm:$0xf]
    %v105 = vld [vmem:[%s1 + $0x110] sm:$0xf]
    %v106 = vld [vmem:[%s1 + $0x114] sm:$0xf]
    %v107 = vld [vmem:[%s1 + $0x118] sm:$0xf]
    %v108 = vld [vmem:[%s1 + $0x11c] sm:$0xf]
    %v121 = vunpack.c.l.b16 %v25
    %v122 = vunpack.c.h.b16 %v25
    %v123 = vunpack.c.l.b16 %v26
    %v124 = vunpack.c.h.b16 %v26
    %v125 = vunpack.c.l.b16 %v27
    %v126 = vunpack.c.l.b16 %v28
    %v127 = vunpack.c.h.b16 %v28
    %v128 = vunpack.c.l.b16 %v29
    %v129 = vunpack.c.h.b16 %v29
    %v130 = vunpack.c.l.b16 %v30
    %v131 = vunpack.c.l.b16 %v31
    %v132 = vunpack.c.h.b16 %v31
    %v133 = vunpack.c.l.b16 %v32
    %v134 = vunpack.c.h.b16 %v32
    %v135 = vunpack.c.l.b16 %v33
    %v136 = vunpack.c.l.b16 %v34
    %v137 = vunpack.c.h.b16 %v34
    %v138 = vunpack.c.l.b16 %v35
    %v139 = vunpack.c.h.b16 %v35
    %v140 = vunpack.c.l.b16 %v36
    %v141 = vpack.c.b16 %v126, %v121
    %v142 = vpack.c.b16 %v127, %v122
    %v143 = vpack.c.b16 %v128, %v123
    %v144 = vpack.c.b16 %v129, %v124
    %v145 = vpack.c.b16 %v130, %v125
    %v146 = vpack.c.b16 %v136, %v131
    %v147 = vpack.c.b16 %v137, %v132
    %v148 = vpack.c.b16 %v138, %v133
    %v149 = vpack.c.b16 %v139, %v134
    %v150 = vpack.c.b16 %v140, %v135
    %v231 = vunpack.c.l.b16 %v37
    %v232 = vunpack.c.l.b16 %v38
    %v233 = vunpack.c.l.b16 %v39
    %v234 = vunpack.c.l.b16 %v40
    %v235 = vunpack.c.l.b16 %v41
    %v236 = vunpack.c.l.b16 %v42
    %v237 = vunpack.c.l.b16 %v43
    %v238 = vunpack.c.l.b16 %v44
    %v239 = vunpack.c.l.b16 %v45
    %v240 = vunpack.c.l.b16 %v46
    %v241 = vunpack.c.l.b16 %v47
    %v242 = vunpack.c.l.b16 %v48
    %v243 = vunpack.c.l.b16 %v49
    %v244 = vunpack.c.l.b16 %v50
    %v245 = vunpack.c.l.b16 %v51
    %v246 = vunpack.c.l.b16 %v52
    %v247 = vunpack.c.l.b16 %v53
    %v248 = vunpack.c.l.b16 %v54
    %v249 = vunpack.c.l.b16 %v55
    %v250 = vunpack.c.l.b16 %v56
    %v251 = vunpack.c.l.b16 %v57
    %v252 = vunpack.c.l.b16 %v58
    %v253 = vunpack.c.l.b16 %v59
    %v254 = vunpack.c.l.b16 %v60
    %v255 = vunpack.c.l.b16 %v61
    %v256 = vunpack.c.l.b16 %v62
    %v257 = vunpack.c.l.b16 %v63
    %v258 = vunpack.c.l.b16 %v64
    %v259 = vunpack.c.l.b16 %v65
    %v260 = vunpack.c.l.b16 %v66
    %v261 = vunpack.c.l.b16 %v67
    %v262 = vunpack.c.l.b16 %v68
    %v263 = vunpack.c.l.b16 %v69
    %v264 = vunpack.c.l.b16 %v70
    %v265 = vunpack.c.l.b16 %v71
    %v266 = vunpack.c.l.b16 %v72
    %v267 = vunpack.c.l.b16 %v73
    %v268 = vunpack.c.l.b16 %v74
    %v269 = vunpack.c.l.b16 %v75
    %v270 = vunpack.c.l.b16 %v76
    %v271 = vunpack.c.l.b16 %v77
    %v272 = vunpack.c.l.b16 %v78
    %v273 = vunpack.c.l.b16 %v79
    %v274 = vunpack.c.l.b16 %v80
    %v275 = vunpack.c.l.b16 %v81
    %v276 = vunpack.c.l.b16 %v82
    %v277 = vunpack.c.l.b16 %v83
    %v278 = vunpack.c.l.b16 %v84
    %v279 = vunpack.c.l.b16 %v85
    %v280 = vunpack.c.l.b16 %v86
    %v281 = vunpack.c.l.b16 %v87
    %v282 = vunpack.c.l.b16 %v88
    %v283 = vunpack.c.l.b16 %v89
    %v284 = vunpack.c.l.b16 %v90
    %v285 = vunpack.c.l.b16 %v91
    %v286 = vunpack.c.l.b16 %v92
    %v287 = vunpack.c.l.b16 %v93
    %v288 = vunpack.c.l.b16 %v94
    %v289 = vunpack.c.l.b16 %v95
    %v290 = vunpack.c.l.b16 %v96
    %v291 = vunpack.c.l.b16 %v97
    %v292 = vunpack.c.l.b16 %v98
    %v293 = vunpack.c.l.b16 %v99
    %v294 = vunpack.c.l.b16 %v100
    %v295 = vunpack.c.l.b16 %v101
    %v296 = vunpack.c.l.b16 %v102
    %v297 = vunpack.c.l.b16 %v103
    %v298 = vunpack.c.l.b16 %v104
    %v299 = vunpack.c.l.b16 %v105
    %v300 = vunpack.c.l.b16 %v106
    %v301 = vunpack.c.l.b16 %v107
    %v302 = vunpack.c.l.b16 %v108
    %v303 = vpack.c.b16 %v232, %v231
    %v304 = vpack.c.b16 %v234, %v233
    %v305 = vpack.c.b16 %v236, %v235
    %v306 = vpack.c.b16 %v238, %v237
    %v307 = vpack.c.b16 %v240, %v239
    %v308 = vpack.c.b16 %v242, %v241
    %v309 = vpack.c.b16 %v244, %v243
    %v310 = vpack.c.b16 %v246, %v245
    %v311 = vpack.c.b16 %v248, %v247
    %v312 = vpack.c.b16 %v250, %v249
    %v313 = vpack.c.b16 %v252, %v251
    %v314 = vpack.c.b16 %v254, %v253
    %v315 = vpack.c.b16 %v256, %v255
    %v316 = vpack.c.b16 %v258, %v257
    %v317 = vpack.c.b16 %v260, %v259
    %v318 = vpack.c.b16 %v262, %v261
    %v319 = vpack.c.b16 %v264, %v263
    %v320 = vpack.c.b16 %v266, %v265
    %v321 = vpack.c.b16 %v268, %v267
    %v322 = vpack.c.b16 %v270, %v269
    %v323 = vpack.c.b16 %v272, %v271
    %v324 = vpack.c.b16 %v274, %v273
    %v325 = vpack.c.b16 %v276, %v275
    %v326 = vpack.c.b16 %v278, %v277
    %v327 = vpack.c.b16 %v280, %v279
    %v328 = vpack.c.b16 %v282, %v281
    %v329 = vpack.c.b16 %v284, %v283
    %v330 = vpack.c.b16 %v286, %v285
    %v331 = vpack.c.b16 %v288, %v287
    %v332 = vpack.c.b16 %v290, %v289
    %v333 = vpack.c.b16 %v292, %v291
    %v334 = vpack.c.b16 %v294, %v293
    %v335 = vpack.c.b16 %v296, %v295
    %v336 = vpack.c.b16 %v298, %v297
    %v337 = vpack.c.b16 %v300, %v299
    %v338 = vpack.c.b16 %v302, %v301
    %vm375 = vcmask 523264
    %v377 = vsel %vm375, %v145, 0
    %v380 = vsel %vm375, %v150, 0
    %382 = vmatprep.subr.bf16.mxu0 0
    %383 = vmatpush1.bf16.msra.mxu0 %v303
    %384 = vmatprep.subr.bf16.mxu0 0
    %385 = vmatpush1.bf16.msra.mxu0 %v304
    %386 = vmatprep.subr.bf16.mxu0 0
    %387 = vmatpush1.bf16.msra.mxu0 %v305
    %388 = vmatprep.subr.bf16.mxu0 0
    %389 = vmatpush1.bf16.msra.mxu0 %v306
    %390 = vmatprep.subr.bf16.mxu0 0
    %391 = vmatpush1.bf16.msra.mxu0 %v307
    %392 = vmatprep.subr.bf16.mxu0 0
    %393 = vmatpush1.bf16.msra.mxu0 %v308
    %394 = vmatprep.subr.bf16.mxu0 0
    %395 = vmatpush1.bf16.msra.mxu0 %v309
    %396 = vmatprep.subr.bf16.mxu0 0
    %397 = vmatpush1.bf16.msra.mxu0 %v310
    %398 = vmatprep.subr.bf16.mxu0 0
    %399 = vmatpush1.bf16.msra.mxu0 %v311
    %400 = vmatprep.subr.bf16.mxu0 0
    %401 = vmatpush1.bf16.msra.mxu0 %v312
    %402 = vmatprep.subr.bf16.mxu0 0
    %403 = vmatpush1.bf16.msra.mxu0 %v313
    %404 = vmatprep.subr.bf16.mxu0 0
    %405 = vmatpush1.bf16.msra.mxu0 %v314
    %406 = vmatprep.subr.bf16.mxu0 0
    %407 = vmatpush1.bf16.msra.mxu0 %v315
    %408 = vmatprep.subr.bf16.mxu0 0
    %409 = vmatpush1.bf16.msra.mxu0 %v316
    %410 = vmatprep.subr.bf16.mxu0 0
    %411 = vmatpush1.bf16.msra.mxu0 %v317
    %412 = vmatprep.subr.bf16.mxu0 0
    %413 = vmatpush1.bf16.msra.mxu0 %v318
    %414 = vmatprep.mubr.bf16.mxu0 %v142
    %415 = vmatmul.mubr.bf16.gmra.mrb[0].mxu0 %v141
    %v416 = vpop.f32.mrb[0].mxu0
    %v417 = vadd.f32 0.0, %v416
    %v418 = vpop.f32.mrb[0].mxu0
    %v419 = vpop.f32.mrb[0].mxu0
    %v420 = vadd.f32 0.0, %v419
    %v421 = vpop.f32.mrb[0].mxu0
    %422 = vmatprep.mubr.bf16.mxu0 %v147
    %423 = vmatmul.mubr.bf16.gmra.mrb[0].mxu0 %v146
    %v424 = vpop.f32.mrb[0].mxu0
    %v425 = vadd.f32 0.0, %v424
    %v426 = vpop.f32.mrb[0].mxu0
    %v427 = vpop.f32.mrb[0].mxu0
    %v428 = vadd.f32 0.0, %v427
    %v429 = vpop.f32.mrb[0].mxu0
    %430 = vdwg.mxu0
    %431 = vmatprep.subr.bf16.mxu0 0
    %432 = vmatpush1.bf16.msra.mxu0 %v319
    %433 = vmatprep.subr.bf16.mxu0 0
    %434 = vmatpush1.bf16.msra.mxu0 %v320
    %435 = vmatprep.subr.bf16.mxu0 0
    %436 = vmatpush1.bf16.msra.mxu0 %v321
    %437 = vmatprep.subr.bf16.mxu0 0
    %438 = vmatpush1.bf16.msra.mxu0 %v322
    %439 = vmatprep.subr.bf16.mxu0 0
    %440 = vmatpush1.bf16.msra.mxu0 %v323
    %441 = vmatprep.subr.bf16.mxu0 0
    %442 = vmatpush1.bf16.msra.mxu0 %v324
    %443 = vmatprep.subr.bf16.mxu0 0
    %444 = vmatpush1.bf16.msra.mxu0 %v325
    %445 = vmatprep.subr.bf16.mxu0 0
    %446 = vmatpush1.bf16.msra.mxu0 %v326
    %447 = vmatprep.subr.bf16.mxu0 0
    %448 = vmatpush1.bf16.msra.mxu0 %v327
    %449 = vmatprep.subr.bf16.mxu0 0
    %450 = vmatpush1.bf16.msra.mxu0 %v328
    %451 = vmatprep.subr.bf16.mxu0 0
    %452 = vmatpush1.bf16.msra.mxu0 %v329
    %453 = vmatprep.subr.bf16.mxu0 0
    %454 = vmatpush1.bf16.msra.mxu0 %v330
    %455 = vmatprep.subr.bf16.mxu0 0
    %456 = vmatpush1.bf16.msra.mxu0 %v331
    %457 = vmatprep.subr.bf16.mxu0 0
    %458 = vmatpush1.bf16.msra.mxu0 %v332
    %459 = vmatprep.subr.bf16.mxu0 0
    %460 = vmatpush1.bf16.msra.mxu0 %v333
    %461 = vmatprep.subr.bf16.mxu0 0
    %462 = vmatpush1.bf16.msra.mxu0 %v334
    %463 = vmatprep.mubr.bf16.mxu0 %v144
    %464 = vmatmul.mubr.bf16.gmra.mrb[0].mxu0 %v143
    %v465 = vpop.f32.mrb[0].mxu0
    %v466 = vadd.f32 %v417, %v465
    %v467 = vpop.f32.mrb[0].mxu0
    %v468 = vpop.f32.mrb[0].mxu0
    %v469 = vadd.f32 %v420, %v468
    %v470 = vpop.f32.mrb[0].mxu0
    %471 = vmatprep.mubr.bf16.mxu0 %v149
    %472 = vmatmul.mubr.bf16.gmra.mrb[0].mxu0 %v148
    %v473 = vpop.f32.mrb[0].mxu0
    %v474 = vadd.f32 %v425, %v473
    %v475 = vpop.f32.mrb[0].mxu0
    %v476 = vpop.f32.mrb[0].mxu0
    %v477 = vadd.f32 %v428, %v476
    %v478 = vpop.f32.mrb[0].mxu0
    %479 = vdwg.mxu0
    %480 = vmatprep.subr.bf16.mxu0 0
    %481 = vmatpush1.bf16.msra.mxu0 %v335
    %482 = vmatprep.subr.bf16.mxu0 0
    %483 = vmatpush1.bf16.msra.mxu0 %v336
    %484 = vmatprep.subr.bf16.mxu0 0
    %485 = vmatpush1.bf16.msra.mxu0 %v337
    %486 = vmatprep.subr.bf16.mxu0 0
    %487 = vmatpush1.bf16.msra.mxu0 %v338
    %488 = vmatprep.subr.bf16.mxu0 0
    %489 = vmatpush1.bf16.msra.mxu0 0
    %490 = vmatprep.subr.bf16.mxu0 0
    %491 = vmatpush1.bf16.msra.mxu0 0
    %492 = vmatprep.subr.bf16.mxu0 0
    %493 = vmatpush1.bf16.msra.mxu0 0
    %494 = vmatprep.subr.bf16.mxu0 0
    %495 = vmatpush1.bf16.msra.mxu0 0
    %496 = vmatprep.subr.bf16.mxu0 0
    %497 = vmatpush1.bf16.msra.mxu0 0
    %498 = vmatprep.subr.bf16.mxu0 0
    %499 = vmatpush1.bf16.msra.mxu0 0
    %500 = vmatprep.subr.bf16.mxu0 0
    %501 = vmatpush1.bf16.msra.mxu0 0
    %502 = vmatprep.subr.bf16.mxu0 0
    %503 = vmatpush1.bf16.msra.mxu0 0
    %504 = vmatprep.subr.bf16.mxu0 0
    %505 = vmatpush1.bf16.msra.mxu0 0
    %506 = vmatprep.subr.bf16.mxu0 0
    %507 = vmatpush1.bf16.msra.mxu0 0
    %508 = vmatprep.subr.bf16.mxu0 0
    %509 = vmatpush1.bf16.msra.mxu0 0
    %510 = vmatprep.subr.bf16.mxu0 0
    %511 = vmatpush1.bf16.msra.mxu0 0
    %512 = vmatprep.mubr.bf16.mxu0 0
    %513 = vmatmul.mubr.bf16.gmra.mrb[0].mxu0 %v377
    %v514 = vpop.f32.mrb[0].mxu0
    %v515 = vadd.f32 %v466, %v514
    %v516 = vpop.f32.mrb[0].mxu0
    %v517 = vpop.f32.mrb[0].mxu0
    %v518 = vadd.f32 %v469, %v517
    %v519 = vpop.f32.mrb[0].mxu0
    %520 = vmatprep.mubr.bf16.mxu0 0
    %521 = vmatmul.mubr.bf16.gmra.mrb[0].mxu0 %v380
    %v522 = vpop.f32.mrb[0].mxu0
    %v523 = vadd.f32 %v474, %v522
    %v524 = vpop.f32.mrb[0].mxu0
    %v525 = vpop.f32.mrb[0].mxu0
    %v526 = vadd.f32 %v477, %v525
    %v527 = vpop.f32.mrb[0].mxu0
    %528 = vdwg.mxu0
    %v529 = vld [vmem:[%s2] sm:$0x1]
    %v531 = vlaneseq
    %v532 = vshrl.u32 %v531, 7
    %v533 = vsub.s32 0, %v532
    %v534 = vrot.slane %v529, %v533
    %v536 = vmul.f32 %v515, %v534
    %v537 = vmul.f32 %v518, %v534
    %v538 = vmul.f32 %v523, %v534
    %v539 = vmul.f32 %v526, %v534
    %v540 = vld [vmem:[%s3] sm:$0x1]
    %v542 = vlaneseq
    %v543 = vshrl.u32 %v542, 7
    %v544 = vsub.s32 0, %v543
    %v545 = vrot.slane %v540, %v544
    %v547 = vadd.f32 %v536, %v545
    %v548 = vadd.f32 %v537, %v545
    %v549 = vadd.f32 %v538, %v545
    %v550 = vadd.f32 %v539, %v545
    %v551 = vmax.f32 %v547, 0.0
    %v552 = vmax.f32 %v548, 0.0
    %v553 = vmax.f32 %v549, 0.0
    %v554 = vmax.f32 %v550, 0.0
    %v555 = vadd.f32 %v551, %v552
    %v556 = vadd.f32 %v555, %v553
    %v557 = vadd.f32 %v556, %v554
    %v558 = vmul.f32 %v557, 0.25
    %v559 = vpack.c.bf16 %v558, %v558
    %v560 = vld [vmem:[%s4] sm:$0xf]
    %v561 = vld [vmem:[%s4 + $0x4] sm:$0xf]
    %v562 = vld [vmem:[%s4 + $0x8] sm:$0xf]
    %v563 = vld [vmem:[%s4 + $0xc] sm:$0xf]
    %v564 = vld [vmem:[%s4 + $0x10] sm:$0xf]
    %v565 = vld [vmem:[%s4 + $0x14] sm:$0xf]
    %v566 = vld [vmem:[%s4 + $0x18] sm:$0xf]
    %v567 = vld [vmem:[%s4 + $0x1c] sm:$0xf]
    %s568 = scalar_lea.vmem %s4, 32
    %v569 = vld [vmem:[%s568] sm:$0xf]
    %v570 = vld [vmem:[%s568 + $0x4] sm:$0xf]
    %v571 = vld [vmem:[%s568 + $0x8] sm:$0xf]
    %v572 = vld [vmem:[%s568 + $0xc] sm:$0xf]
    %v573 = vld [vmem:[%s568 + $0x10] sm:$0xf]
    %v574 = vld [vmem:[%s568 + $0x14] sm:$0xf]
    %v575 = vld [vmem:[%s568 + $0x18] sm:$0xf]
    %v576 = vld [vmem:[%s568 + $0x1c] sm:$0xf]
    %v578 = vrot.slane %v559, 1
    %v587 = vunpack.c.l.b16 %v569
    %v588 = vunpack.c.l.b16 %v570
    %v589 = vunpack.c.l.b16 %v571
    %v590 = vunpack.c.l.b16 %v572
    %v591 = vunpack.c.l.b16 %v573
    %v592 = vunpack.c.l.b16 %v574
    %v593 = vunpack.c.l.b16 %v575
    %v594 = vunpack.c.l.b16 %v576
    %v595 = vpack.c.b16 %v588, %v587
    %v596 = vpack.c.b16 %v590, %v589
    %v597 = vpack.c.b16 %v592, %v591
    %v598 = vpack.c.b16 %v594, %v593
    %v604 = vsel %vm375, %v578, 0
    %606 = vmatprep.subr.bf16.mxu0 0
    %607 = vmatpush1.bf16.msra.mxu0 %v595
    %608 = vmatprep.subr.bf16.mxu0 0
    %609 = vmatpush1.bf16.msra.mxu0 %v596
    %610 = vmatprep.subr.bf16.mxu0 0
    %611 = vmatpush1.bf16.msra.mxu0 %v597
    %612 = vmatprep.subr.bf16.mxu0 0
    %613 = vmatpush1.bf16.msra.mxu0 %v598
    %614 = vmatprep.subr.bf16.mxu0 0
    %615 = vmatpush1.bf16.msra.mxu0 0
    %616 = vmatprep.subr.bf16.mxu0 0
    %617 = vmatpush1.bf16.msra.mxu0 0
    %618 = vmatprep.subr.bf16.mxu0 0
    %619 = vmatpush1.bf16.msra.mxu0 0
    %620 = vmatprep.subr.bf16.mxu0 0
    %621 = vmatpush1.bf16.msra.mxu0 0
    %622 = vmatprep.subr.bf16.mxu0 0
    %623 = vmatpush1.bf16.msra.mxu0 0
    %624 = vmatprep.subr.bf16.mxu0 0
    %625 = vmatpush1.bf16.msra.mxu0 0
    %626 = vmatprep.subr.bf16.mxu0 0
    %627 = vmatpush1.bf16.msra.mxu0 0
    %628 = vmatprep.subr.bf16.mxu0 0
    %629 = vmatpush1.bf16.msra.mxu0 0
    %630 = vmatprep.subr.bf16.mxu0 0
    %631 = vmatpush1.bf16.msra.mxu0 0
    %632 = vmatprep.subr.bf16.mxu0 0
    %633 = vmatpush1.bf16.msra.mxu0 0
    %634 = vmatprep.subr.bf16.mxu0 0
    %635 = vmatpush1.bf16.msra.mxu0 0
    %636 = vmatprep.subr.bf16.mxu0 0
    %637 = vmatpush1.bf16.msra.mxu0 0
    %638 = vmatprep.mubr.bf16.mxu0 0
    %639 = vmatmul.mubr.bf16.gmra.mrb[0].mxu0 %v604
    %v640 = vpop.f32.mrb[0].mxu0
    %v641 = vadd.f32 0.0, %v640
    %v642 = vpop.f32.mrb[0].mxu0
    %v643 = vpop.f32.mrb[0].mxu0
    %v644 = vpop.f32.mrb[0].mxu0
    %645 = vdwg.mxu0
    %v654 = vunpack.c.l.b16 %v560
    %v655 = vunpack.c.l.b16 %v561
    %v656 = vunpack.c.l.b16 %v562
    %v657 = vunpack.c.l.b16 %v563
    %v658 = vunpack.c.l.b16 %v564
    %v659 = vunpack.c.l.b16 %v565
    %v660 = vunpack.c.l.b16 %v566
    %v661 = vunpack.c.l.b16 %v567
    %v662 = vpack.c.b16 %v655, %v654
    %v663 = vpack.c.b16 %v657, %v656
    %v664 = vpack.c.b16 %v659, %v658
    %v665 = vpack.c.b16 %v661, %v660
    %v671 = vsel %vm375, %v559, 0
    %673 = vmatprep.subr.bf16.mxu0 0
    %674 = vmatpush1.bf16.msra.mxu0 %v662
    %675 = vmatprep.subr.bf16.mxu0 0
    %676 = vmatpush1.bf16.msra.mxu0 %v663
    %677 = vmatprep.subr.bf16.mxu0 0
    %678 = vmatpush1.bf16.msra.mxu0 %v664
    %679 = vmatprep.subr.bf16.mxu0 0
    %680 = vmatpush1.bf16.msra.mxu0 %v665
    %681 = vmatprep.subr.bf16.mxu0 0
    %682 = vmatpush1.bf16.msra.mxu0 0
    %683 = vmatprep.subr.bf16.mxu0 0
    %684 = vmatpush1.bf16.msra.mxu0 0
    %685 = vmatprep.subr.bf16.mxu0 0
    %686 = vmatpush1.bf16.msra.mxu0 0
    %687 = vmatprep.subr.bf16.mxu0 0
    %688 = vmatpush1.bf16.msra.mxu0 0
    %689 = vmatprep.subr.bf16.mxu0 0
    %690 = vmatpush1.bf16.msra.mxu0 0
    %691 = vmatprep.subr.bf16.mxu0 0
    %692 = vmatpush1.bf16.msra.mxu0 0
    %693 = vmatprep.subr.bf16.mxu0 0
    %694 = vmatpush1.bf16.msra.mxu0 0
    %695 = vmatprep.subr.bf16.mxu0 0
    %696 = vmatpush1.bf16.msra.mxu0 0
    %697 = vmatprep.subr.bf16.mxu0 0
    %698 = vmatpush1.bf16.msra.mxu0 0
    %699 = vmatprep.subr.bf16.mxu0 0
    %700 = vmatpush1.bf16.msra.mxu0 0
    %701 = vmatprep.subr.bf16.mxu0 0
    %702 = vmatpush1.bf16.msra.mxu0 0
    %703 = vmatprep.subr.bf16.mxu0 0
    %704 = vmatpush1.bf16.msra.mxu0 0
    %705 = vmatprep.mubr.bf16.mxu0 0
    %706 = vmatmul.mubr.bf16.gmra.mrb[0].mxu0 %v671
    %v707 = vpop.f32.mrb[0].mxu0
    %v708 = vadd.f32 %v641, %v707
    %v709 = vpop.f32.mrb[0].mxu0
    %v710 = vpop.f32.mrb[0].mxu0
    %v711 = vpop.f32.mrb[0].mxu0
    %712 = vdwg.mxu0
    %s713 = scalar_lea.vmem %s4, 64
    %v714 = vld [vmem:[%s713] sm:$0xf]
    %v715 = vld [vmem:[%s713 + $0x4] sm:$0xf]
    %v716 = vld [vmem:[%s713 + $0x8] sm:$0xf]
    %v717 = vld [vmem:[%s713 + $0xc] sm:$0xf]
    %v718 = vld [vmem:[%s713 + $0x10] sm:$0xf]
    %v719 = vld [vmem:[%s713 + $0x14] sm:$0xf]
    %v720 = vld [vmem:[%s713 + $0x18] sm:$0xf]
    %v721 = vld [vmem:[%s713 + $0x1c] sm:$0xf]
    %v722 = vrot.slane %v559, 2
    %v731 = vunpack.c.l.b16 %v714
    %v732 = vunpack.c.l.b16 %v715
    %v733 = vunpack.c.l.b16 %v716
    %v734 = vunpack.c.l.b16 %v717
    %v735 = vunpack.c.l.b16 %v718
    %v736 = vunpack.c.l.b16 %v719
    %v737 = vunpack.c.l.b16 %v720
    %v738 = vunpack.c.l.b16 %v721
    %v739 = vpack.c.b16 %v732, %v731
    %v740 = vpack.c.b16 %v734, %v733
    %v741 = vpack.c.b16 %v736, %v735
    %v742 = vpack.c.b16 %v738, %v737
    %v748 = vsel %vm375, %v722, 0
    %750 = vmatprep.subr.bf16.mxu0 0
    %751 = vmatpush1.bf16.msra.mxu0 %v739
    %752 = vmatprep.subr.bf16.mxu0 0
    %753 = vmatpush1.bf16.msra.mxu0 %v740
    %754 = vmatprep.subr.bf16.mxu0 0
    %755 = vmatpush1.bf16.msra.mxu0 %v741
    %756 = vmatprep.subr.bf16.mxu0 0
    %757 = vmatpush1.bf16.msra.mxu0 %v742
    %758 = vmatprep.subr.bf16.mxu0 0
    %759 = vmatpush1.bf16.msra.mxu0 0
    %760 = vmatprep.subr.bf16.mxu0 0
    %761 = vmatpush1.bf16.msra.mxu0 0
    %762 = vmatprep.subr.bf16.mxu0 0
    %763 = vmatpush1.bf16.msra.mxu0 0
    %764 = vmatprep.subr.bf16.mxu0 0
    %765 = vmatpush1.bf16.msra.mxu0 0
    %766 = vmatprep.subr.bf16.mxu0 0
    %767 = vmatpush1.bf16.msra.mxu0 0
    %768 = vmatprep.subr.bf16.mxu0 0
    %769 = vmatpush1.bf16.msra.mxu0 0
    %770 = vmatprep.subr.bf16.mxu0 0
    %771 = vmatpush1.bf16.msra.mxu0 0
    %772 = vmatprep.subr.bf16.mxu0 0
    %773 = vmatpush1.bf16.msra.mxu0 0
    %774 = vmatprep.subr.bf16.mxu0 0
    %775 = vmatpush1.bf16.msra.mxu0 0
    %776 = vmatprep.subr.bf16.mxu0 0
    %777 = vmatpush1.bf16.msra.mxu0 0
    %778 = vmatprep.subr.bf16.mxu0 0
    %779 = vmatpush1.bf16.msra.mxu0 0
    %780 = vmatprep.subr.bf16.mxu0 0
    %781 = vmatpush1.bf16.msra.mxu0 0
    %782 = vmatprep.mubr.bf16.mxu0 0
    %783 = vmatmul.mubr.bf16.gmra.mrb[0].mxu0 %v748
    %v784 = vpop.f32.mrb[0].mxu0
    %v785 = vadd.f32 0.0, %v784
    %v786 = vpop.f32.mrb[0].mxu0
    %v787 = vpop.f32.mrb[0].mxu0
    %v788 = vpop.f32.mrb[0].mxu0
    %789 = vdwg.mxu0
    %v790 = vadd.f32 %v708, %v785
    %s791 = scalar_lea.vmem %s4, 96
    %v792 = vld [vmem:[%s791] sm:$0xf]
    %v793 = vld [vmem:[%s791 + $0x4] sm:$0xf]
    %v794 = vld [vmem:[%s791 + $0x8] sm:$0xf]
    %v795 = vld [vmem:[%s791 + $0xc] sm:$0xf]
    %v796 = vld [vmem:[%s791 + $0x10] sm:$0xf]
    %v797 = vld [vmem:[%s791 + $0x14] sm:$0xf]
    %v798 = vld [vmem:[%s791 + $0x18] sm:$0xf]
    %v799 = vld [vmem:[%s791 + $0x1c] sm:$0xf]
    %v800 = vrot.slane %v559, 3
    %v809 = vunpack.c.l.b16 %v792
    %v810 = vunpack.c.l.b16 %v793
    %v811 = vunpack.c.l.b16 %v794
    %v812 = vunpack.c.l.b16 %v795
    %v813 = vunpack.c.l.b16 %v796
    %v814 = vunpack.c.l.b16 %v797
    %v815 = vunpack.c.l.b16 %v798
    %v816 = vunpack.c.l.b16 %v799
    %v817 = vpack.c.b16 %v810, %v809
    %v818 = vpack.c.b16 %v812, %v811
    %v819 = vpack.c.b16 %v814, %v813
    %v820 = vpack.c.b16 %v816, %v815
    %v826 = vsel %vm375, %v800, 0
    %828 = vmatprep.subr.bf16.mxu0 0
    %829 = vmatpush1.bf16.msra.mxu0 %v817
    %830 = vmatprep.subr.bf16.mxu0 0
    %831 = vmatpush1.bf16.msra.mxu0 %v818
    %832 = vmatprep.subr.bf16.mxu0 0
    %833 = vmatpush1.bf16.msra.mxu0 %v819
    %834 = vmatprep.subr.bf16.mxu0 0
    %835 = vmatpush1.bf16.msra.mxu0 %v820
    %836 = vmatprep.subr.bf16.mxu0 0
    %837 = vmatpush1.bf16.msra.mxu0 0
    %838 = vmatprep.subr.bf16.mxu0 0
    %839 = vmatpush1.bf16.msra.mxu0 0
    %840 = vmatprep.subr.bf16.mxu0 0
    %841 = vmatpush1.bf16.msra.mxu0 0
    %842 = vmatprep.subr.bf16.mxu0 0
    %843 = vmatpush1.bf16.msra.mxu0 0
    %844 = vmatprep.subr.bf16.mxu0 0
    %845 = vmatpush1.bf16.msra.mxu0 0
    %846 = vmatprep.subr.bf16.mxu0 0
    %847 = vmatpush1.bf16.msra.mxu0 0
    %848 = vmatprep.subr.bf16.mxu0 0
    %849 = vmatpush1.bf16.msra.mxu0 0
    %850 = vmatprep.subr.bf16.mxu0 0
    %851 = vmatpush1.bf16.msra.mxu0 0
    %852 = vmatprep.subr.bf16.mxu0 0
    %853 = vmatpush1.bf16.msra.mxu0 0
    %854 = vmatprep.subr.bf16.mxu0 0
    %855 = vmatpush1.bf16.msra.mxu0 0
    %856 = vmatprep.subr.bf16.mxu0 0
    %857 = vmatpush1.bf16.msra.mxu0 0
    %858 = vmatprep.subr.bf16.mxu0 0
    %859 = vmatpush1.bf16.msra.mxu0 0
    %860 = vmatprep.mubr.bf16.mxu0 0
    %861 = vmatmul.mubr.bf16.gmra.mrb[0].mxu0 %v826
    %v862 = vpop.f32.mrb[0].mxu0
    %v863 = vadd.f32 0.0, %v862
    %v864 = vpop.f32.mrb[0].mxu0
    %v865 = vpop.f32.mrb[0].mxu0
    %v866 = vpop.f32.mrb[0].mxu0
    %867 = vdwg.mxu0
    %v868 = vadd.f32 %v790, %v863
    %v869 = vld [vmem:[%s5] sm:$0x1]
    %v871 = vlaneseq
    %v872 = vshrl.u32 %v871, 7
    %v873 = vsub.s32 0, %v872
    %v874 = vrot.slane %v869, %v873
    %v876 = vadd.f32 %v868, %v874
    %877 = vst [vmem:[#allocation2] sm:$0x3] %v876
    // Predicated region
    $region26: #{student_s_forward.3} parent=1 // pred_check
      _
    $region27: #{student_s_forward.3} parent=1 // pred_check_branch
      %879 = sbr.rel (0) target = $region29
    $region28: #{student_s_forward.3} parent=1 // pred_region
      %s881 = ssub.s32 32, 32
      %882 = vsyncadd [#allocation3], %s881
      %s884 = sshll.u32 [#allocation2], 4
      %s885 = int_to_ptr.vmem [resolvable:$true] %s884
      %887 = dma.vmem_to_hbm [thread:$0]  %s885, 32, %s6, [#allocation3]
    $region29: #{student_s_forward.3} parent=1 // pred_fallthru
      _
    // Predicated region
    $region30: #{student_s_forward.3} parent=1 // pred_check
      _
    $region31: #{student_s_forward.3} parent=1 // pred_check_branch
      %889 = sbr.rel (0) target = $region33
    $region32: #{student_s_forward.3} parent=1 // pred_region
      %890 = dma.done [#allocation3], 32
    $region33: #{student_s_forward.3} parent=1 // pred_fallthru
      _
    %891 = vsyncpa [#allocation3], 1

</llo_original>
